<compile_context>
chip_gen: v7x
topology: tpu7x:2x2x1
jax: 0.10.0
libtpu: 0.0.40
codegen_flags: <defaults>
</compile_context>

<pallas_src>
import jax
import jax.numpy as jnp
from jax.experimental import pallas as pl
from jax.experimental.pallas import tpu as pltpu


def identity(x: jax.Array) -> jax.Array:
    """Exact nn.Identity forward: return the input unchanged (zero cost)."""
    return x


def _copy_kernel(x_ref, o_ref):
    # The entire "forward" of Identity: move the tile through VMEM unchanged.
    o_ref[...] = x_ref[...]


_LANE_CANDIDATES = (4096, 2048, 1024, 512, 256, 128)
_TARGET_TILE_BYTES = 2 * 1024 * 1024  # ~2 MiB/tile -> ~8 MiB VMEM w/ double-buffering


@jax.jit
def identity_pallas(x: jax.Array) -> jax.Array:
    """Pallas TPU implementation of nn.Identity (single HBM read + write)."""
    orig_shape = x.shape
    dtype = x.dtype
    itemsize = jnp.dtype(dtype).itemsize
    total = x.size

    # Sub-32-bit dtypes pack along sublanes: keep tiles at full packed height.
    sub_mult = max(8, 32 // max(itemsize, 1))

    # Widest lane dim (multiple of 128) that divides the element count: wide
    # unmasked stores, few DMA descriptors.  Pad only if nothing fits (rare).
    lanes = next((c for c in _LANE_CANDIDATES if total % c == 0), None)
    pad = 0
    if lanes is None:
        lanes = 128
        pad = pl.cdiv(total, lanes) * lanes - total
    rows = (total + pad) // lanes

    flat = jnp.ravel(x)
    if pad:  # gated: common case (total % 128 == 0) has no extra HBM pass
        flat = jnp.pad(flat, (0, pad))
    x2d = flat.reshape(rows, lanes)

    # Tile rows: ~2 MiB per tile, aligned to the packed sublane height.  A
    # single full-array block is always legal when the tensor is small.
    max_tile_rows = max(
        sub_mult,
        (_TARGET_TILE_BYTES // (lanes * itemsize)) // sub_mult * sub_mult,
    )
    tile_rows = rows if rows <= max_tile_rows else max_tile_rows
    grid = (pl.cdiv(rows, tile_rows),)

    out2d = pl.pallas_call(
        _copy_kernel,
        out_shape=jax.ShapeDtypeStruct((rows, lanes), dtype),
        grid_spec=pltpu.PrefetchScalarGridSpec(
            num_scalar_prefetch=0,
            grid=grid,
            in_specs=[pl.BlockSpec((tile_rows, lanes), lambda i: (i, 0))],
            out_specs=pl.BlockSpec((tile_rows, lanes), lambda i: (i, 0)),
        ),
        compiler_params=pltpu.CompilerParams(
            dimension_semantics=("parallel",),   # lets v7x shard steps over 2 TCs
            vmem_limit_bytes=32 * 1024 * 1024,   # explicit headroom (v5e default is 16 MiB)
        ),
        cost_estimate=pl.CostEstimate(
            flops=0, transcendentals=0, bytes_accessed=2 * total * itemsize
        ),
    )(x2d)

    out_flat = out2d.reshape(-1)
    if pad:
        out_flat = out_flat[:total]
    return out_flat.reshape(orig_shape)


if __name__ == "__main__":
    key = jax.random.PRNGKey(0)
    # Small NCHW input consistent with a VGG16 backbone feature map.
    x = jax.random.normal(key, (2, 4, 16, 16), dtype=jnp.float32)

    y = identity_pallas(x)
    y = jax.block_until_ready(y)
    assert y.shape == x.shape and y.dtype == x.dtype
    assert bool(jnp.array_equal(y, x))

    # Exercise the dtype-aware (packed sublane) path with bf16 at a small size.
    xb = jax.random.normal(jax.random.PRNGKey(1), (2, 8, 8, 16), dtype=jnp.bfloat16)
    yb = jax.block_until_ready(identity_pallas(xb))
    assert yb.shape == xb.shape and yb.dtype == xb.dtype
    assert bool(jnp.array_equal(yb, xb))

    # True nn.Identity equivalent (zero-cost path, no kernel / no HBM traffic).
    assert identity(x) is x

    print("KERNEL_OK")
</pallas_src>

<mosaic_0001>
module attributes {stable_mosaic.version = 11 : i64} {
  func.func @_copy_kernel(%arg0: i32, %arg1: memref<1x2048xf32, #tpu.memory_space<vmem>>, %arg2: memref<1x2048xf32, #tpu.memory_space<vmem>>) attributes {dimension_semantics = [#tpu.dimension_semantics<parallel>], iteration_bounds = array<i64: 1>, scalar_prefetch = 0 : i64, scratch_operands = 0 : i64, tpu.core_type = #tpu.core_type<tc>, window_params = [{transform_indices = @transform_0, window_bounds = array<i64: 1, 2048>}, {transform_indices = @transform_1, window_bounds = array<i64: 1, 2048>}]} {
    %c0 = arith.constant 0 : index
    %c0_0 = arith.constant 0 : index
    %0 = vector.load %arg1[%c0, %c0_0] : memref<1x2048xf32, #tpu.memory_space<vmem>>, vector<1x2048xf32>
    %c0_1 = arith.constant 0 : index
    %c0_2 = arith.constant 0 : index
    %1 = vector.load %arg2[%c0_1, %c0_2] : memref<1x2048xf32, #tpu.memory_space<vmem>>, vector<1x2048xf32>
    tpu.vector_store %arg2[%c0_1, %c0_2], %0 {strides = array<i32>} : memref<1x2048xf32, #tpu.memory_space<vmem>>, vector<1x2048xf32>,
    return
  }
  func.func @transform_0(%arg0: i32) -> (i32, i32) {
    %c0_i32 = arith.constant 0 : i32
    %c0_i32_0 = arith.constant 0 : i32
    return %arg0, %c0_i32 : i32, i32
  }
  func.func @transform_1(%arg0: i32) -> (i32, i32) {
    %c0_i32 = arith.constant 0 : i32
    %c0_i32_0 = arith.constant 0 : i32
    return %arg0, %c0_i32 : i32, i32
  }
}

</mosaic_0001>

<llo_original>
// kernel: identity_pallas.1
$region0: #{identity_pallas.1}
  #allocation0 [shape = 'u32[]', space=smem, size = 0x4, offset = 0x4, fixed_abs, tag = 'smem constant byte address 0x4 - core index']
  #allocation1 [shape = 'u32[144,128]{1,0:T(1,128)}', space=vmem, size = 0x12000, scoped, tag = 'internal scratch']
  %s0 = inlined_call_operand.vmem [shape: f32[1,2048], index: 0, kind: input, shape index: {}]
  %s1 = inlined_call_operand.vmem [shape: f32[1,2048], index: 1, kind: output, shape index: {}]
  %s2 = sld [smem:[#allocation0]]
  $region14: #{identity_pallas.1} parent=0
    _
  %s4 = ssub.s32 1, %s2
  %s5 = scalar_select 0, %s4, %s2
  // Predicated region
  $region2: #{identity_pallas.1} parent=0 // pred_check
    _
  $region3: #{identity_pallas.1} parent=0 // pred_check_branch
    %7 = sbr.rel (0) target = $region5
  $region4: #{identity_pallas.1} parent=0 // pred_region
    _
  $region5: #{identity_pallas.1} parent=0 // pred_fallthru
    _
  %v8 = vld [vmem:[%s0] sm:$0xff]
  %v9 = vld [vmem:[%s0 + $0x8] sm:$0xff]
  %10 = vst [vmem:[%s1] sm:$0xff] %v8
  %11 = vst [vmem:[%s1 + $0x8] sm:$0xff] %v9
  // Predicated region
  $region6: #{identity_pallas.1} parent=0 // pred_check
    _
  $region7: #{identity_pallas.1} parent=0 // pred_check_branch
    %13 = sbr.rel (0) target = $region9
  $region8: #{identity_pallas.1} parent=0 // pred_region
    _
  $region9: #{identity_pallas.1} parent=0 // pred_fallthru
    _
  // Predicated region
  $region10: #{identity_pallas.1} parent=0 // pred_check
    _
  $region11: #{identity_pallas.1} parent=0 // pred_check_branch
    %15 = sbr.rel (0) target = $region13
  $region12: #{identity_pallas.1} parent=0 // pred_region
    _
  $region13: #{identity_pallas.1} parent=0 // pred_fallthru
    _

</llo_original>
